<compile_context>
chip_gen: v7x
topology: tpu7x:2x2x1
jax: 0.10.0
libtpu: 0.0.40
codegen_flags: <defaults>
</compile_context>

<pallas_src>
import functools

import jax
import jax.numpy as jnp
from jax.experimental import pallas as pl
from jax.experimental.pallas import tpu as pltpu


def _round_up(x, m):
    return ((x + m - 1) // m) * m


def _mlp_kernel(uT_ref, iT_ref, w1uT_ref, w1iT_ref, b1_ref, w2_ref, o_ref):
    # hT = ReLU(W1_u^T @ u^T + W1_i^T @ i^T + b1) -> (H_pad, tb), f32 accumulate.
    hT = (
        jnp.dot(w1uT_ref[...], uT_ref[...], preferred_element_type=jnp.float32)
        + jnp.dot(w1iT_ref[...], iT_ref[...], preferred_element_type=jnp.float32)
        + b1_ref[...]  # (H_pad, 1) broadcasts across lanes (batch)
    )
    hT = jnp.maximum(hT, 0.0)
    # Layer 2 (H -> 1): VPU multiply + cross-sublane (XLU) reduction instead of
    # an N=1 MXU matmul.  Result tile stays lane-dense: (1, tb).
    o_ref[...] = jnp.sum(hT * w2_ref[...], axis=0, keepdims=True)


def prepare_params(params, compute_dtype=jnp.bfloat16):
    """One-time layout prep, outside the hot path.

    * Embedding tables stored TRANSPOSED (E_pad, num_rows) in `compute_dtype`
      so the per-call gather emits lane-dense (E_pad, B) activations with no
      wrapper transpose and (for bf16) half the HBM bytes.
    * W1 (2E, H) split into user/item halves (== concat-then-matmul), padded
      and transposed to (H_pad, E_pad) in `compute_dtype`.
    * b1 / W2 / b2 stay f32 (f32 accumulate + f32 epilogue in the kernel).
    """
    E = params["user_emb"].shape[1]
    H = params["w1"].shape[1]
    E_pad = _round_up(E, 8)
    H_pad = _round_up(H, 8)

    def pad_table_T(tbl):
        return jnp.pad(tbl, ((0, 0), (0, E_pad - E))).T.astype(compute_dtype)

    w1 = params["w1"]
    w1u_t = jnp.pad(w1[:E, :], ((0, E_pad - E), (0, H_pad - H))).T.astype(compute_dtype)
    w1i_t = jnp.pad(w1[E:, :], ((0, E_pad - E), (0, H_pad - H))).T.astype(compute_dtype)

    return {
        "user_tbl_T": pad_table_T(params["user_emb"]),   # (E_pad, num_users)
        "item_tbl_T": pad_table_T(params["item_emb"]),   # (E_pad, num_items)
        "w1u_t": w1u_t,                                   # (H_pad, E_pad)
        "w1i_t": w1i_t,                                   # (H_pad, E_pad)
        "b1_col": jnp.pad(params["b1"], (0, H_pad - H)).reshape(H_pad, 1).astype(jnp.float32),
        "w2_col": jnp.pad(params["w2"], ((0, H_pad - H), (0, 0))).astype(jnp.float32),
        "b2": params["b2"].astype(jnp.float32),
    }


def mlp_forward(user_id, item_id, prepped, *, tile_b=8192):
    """Full MLP forward. Embedding gather in JAX glue, MLP hot path in Pallas."""
    user_tbl_T = prepped["user_tbl_T"]
    item_tbl_T = prepped["item_tbl_T"]
    w1u_t, w1i_t = prepped["w1u_t"], prepped["w1i_t"]
    b1_col, w2_col, b2 = prepped["b1_col"], prepped["w2_col"], prepped["b2"]

    E_pad = user_tbl_T.shape[0]
    H_pad = w1u_t.shape[0]
    B = user_id.shape[0]
    dsize = jnp.dtype(user_tbl_T.dtype).itemsize

    # Batch lives on the lane axis: tile is a multiple of 128, large by default
    # (8192) so each grid step moves ~MBs of activations and per-step pipeline
    # overhead amortizes; capped at the padded batch for small B.
    tb = _round_up(min(tile_b, _round_up(B, 128)), 128)
    B_pad = _round_up(B, tb)
    num_tiles = B_pad // tb
    # NOTE(v7x): dimension_semantics=("parallel",) shards the batch grid across
    # the 2 TensorCores; for large batches num_tiles >= 2 keeps both busy.

    uid = jnp.pad(user_id, (0, B_pad - B))
    iid = jnp.pad(item_id, (0, B_pad - B))
    # Column gather from the transposed tables -> activations are already
    # lane-dense (E_pad, B_pad); no wrapper transpose pass.
    u_t = jnp.take(user_tbl_T, uid, axis=1)
    i_t = jnp.take(item_tbl_T, iid, axis=1)

    # Right-sized VMEM limit: double-buffered activation/output tiles, resident
    # weights (counted double-buffered to be safe), hT intermediate, + margin.
    act_buf = 2 * E_pad * tb * dsize
    out_buf = tb * 4
    resident = 2 * H_pad * E_pad * dsize + 2 * H_pad * 4
    hT_bytes = H_pad * tb * 4
    vmem_limit = 2 * (act_buf + out_buf) + 2 * resident + 2 * hT_bytes + (2 << 20)
    vmem_limit = int(min(max(vmem_limit, 4 << 20), 64 << 20))

    out = pl.pallas_call(
        _mlp_kernel,
        out_shape=jax.ShapeDtypeStruct((1, B_pad), jnp.float32),
        grid=(num_tiles,),
        in_specs=[
            pl.BlockSpec((E_pad, tb), lambda b: (0, b)),      # u^T batch tile
            pl.BlockSpec((E_pad, tb), lambda b: (0, b)),      # i^T batch tile
            pl.BlockSpec((H_pad, E_pad), lambda b: (0, 0)),   # W1_u^T (resident)
            pl.BlockSpec((H_pad, E_pad), lambda b: (0, 0)),   # W1_i^T (resident)
            pl.BlockSpec((H_pad, 1), lambda b: (0, 0)),       # b1     (resident)
            pl.BlockSpec((H_pad, 1), lambda b: (0, 0)),       # W2     (resident)
        ],
        out_specs=pl.BlockSpec((1, tb), lambda b: (0, b)),    # lane-dense output
        compiler_params=pltpu.CompilerParams(
            dimension_semantics=("parallel",),
            vmem_limit_bytes=vmem_limit,
        ),
    )(u_t, i_t, w1u_t, w1i_t, b1_col, w2_col)

    # Fold b2 here (scalar add on the tiny output), drop batch padding,
    # restore the (B, 1) shape of the PyTorch module.
    return out[0, :B].reshape(B, 1) + b2.reshape(1, 1)


def init_params(key, embedding_size, hidden_size, num_users, num_items):
    k = jax.random.split(key, 6)
    E, H = embedding_size, hidden_size
    # Embeddings ~ N(0, 1) (PyTorch nn.Embedding default).
    user_emb = jax.random.normal(k[0], (num_users, E), jnp.float32)
    item_emb = jax.random.normal(k[1], (num_items, E), jnp.float32)
    # Linear layers: uniform(-1/sqrt(fan_in), 1/sqrt(fan_in)), stored as (in, out).
    lim1 = 1.0 / jnp.sqrt(2.0 * E)
    w1 = jax.random.uniform(k[2], (2 * E, H), jnp.float32, -lim1, lim1)
    b1 = jax.random.uniform(k[3], (H,), jnp.float32, -lim1, lim1)
    lim2 = 1.0 / jnp.sqrt(float(H))
    w2 = jax.random.uniform(k[4], (H, 1), jnp.float32, -lim2, lim2)
    b2 = jax.random.uniform(k[5], (1,), jnp.float32, -lim2, lim2)
    return {
        "user_emb": user_emb,
        "item_emb": item_emb,
        "w1": w1,
        "b1": b1,
        "w2": w2,
        "b2": b2,
    }


def reference_forward(user_id, item_id, params):
    u = jnp.take(params["user_emb"], user_id, axis=0)
    i = jnp.take(params["item_emb"], item_id, axis=0)
    x = jnp.concatenate([u, i], axis=1)
    h = jnp.maximum(x @ params["w1"] + params["b1"], 0.0)
    return h @ params["w2"] + params["b2"]


if __name__ == "__main__":
    embedding_size = 16
    hidden_size = 32
    num_users = 10
    num_items = 12
    batch = 8

    key = jax.random.PRNGKey(0)
    pkey, ukey, ikey = jax.random.split(key, 3)
    params = init_params(pkey, embedding_size, hidden_size, num_users, num_items)

    user_id = jax.random.randint(ukey, (batch,), 0, num_users, dtype=jnp.int32)
    item_id = jax.random.randint(ikey, (batch,), 0, num_items, dtype=jnp.int32)

    ref = reference_forward(user_id, item_id, params)

    fwd = jax.jit(functools.partial(mlp_forward, tile_b=8192))

    # f32 path: tight comparison against the pure-JAX reference.
    prepped_f32 = prepare_params(params, compute_dtype=jnp.float32)
    out = jax.block_until_ready(fwd(user_id, item_id, prepped_f32))
    assert out.shape == (batch, 1), out.shape
    assert jnp.allclose(out, ref, atol=1e-4, rtol=1e-4), (out, ref)

    # bf16 matmul-operand path (f32 accumulate / f32 epilogue): this is the
    # production default, but bf16 x bf16 dots only exist on the TPU MXU --
    # skip on CPU/interpret backends where the executor cannot run them.
    if jax.default_backend() == "tpu":
        prepped_bf16 = prepare_params(params, compute_dtype=jnp.bfloat16)
        out_bf16 = jax.block_until_ready(fwd(user_id, item_id, prepped_bf16))
        assert out_bf16.shape == (batch, 1), out_bf16.shape
        assert bool(jnp.all(jnp.isfinite(out_bf16)))
        assert jnp.allclose(out_bf16, ref, atol=5e-2, rtol=5e-2), (out_bf16, ref)

    print("KERNEL_OK")
</pallas_src>

<mosaic_0001>
module attributes {stable_mosaic.version = 11 : i64} {
  func.func @_mlp_kernel(%arg0: i32, %arg1: memref<16x128xf32, #tpu.memory_space<vmem>>, %arg2: memref<16x128xf32, #tpu.memory_space<vmem>>, %arg3: memref<32x16xf32, #tpu.memory_space<vmem>>, %arg4: memref<32x16xf32, #tpu.memory_space<vmem>>, %arg5: memref<32x1xf32, #tpu.memory_space<vmem>>, %arg6: memref<32x1xf32, #tpu.memory_space<vmem>>, %arg7: memref<1x128xf32, #tpu.memory_space<vmem>>) attributes {dimension_semantics = [#tpu.dimension_semantics<parallel>], iteration_bounds = array<i64: 1>, scalar_prefetch = 0 : i64, scratch_operands = 0 : i64, tpu.core_type = #tpu.core_type<tc>, window_params = [{transform_indices = @transform_0, window_bounds = array<i64: 16, 128>}, {transform_indices = @transform_1, window_bounds = array<i64: 16, 128>}, {pipeline_mode = #tpu.pipeline_mode<synchronous>, transform_indices = @transform_2, window_bounds = array<i64: 32, 16>}, {pipeline_mode = #tpu.pipeline_mode<synchronous>, transform_indices = @transform_3, window_bounds = array<i64: 32, 16>}, {pipeline_mode = #tpu.pipeline_mode<synchronous>, transform_indices = @transform_4, window_bounds = array<i64: 32, 1>}, {pipeline_mode = #tpu.pipeline_mode<synchronous>, transform_indices = @transform_5, window_bounds = array<i64: 32, 1>}, {transform_indices = @transform_6, window_bounds = array<i64: 1, 128>}]} {
    %c0 = arith.constant 0 : index
    %c0_0 = arith.constant 0 : index
    %0 = vector.load %arg3[%c0, %c0_0] : memref<32x16xf32, #tpu.memory_space<vmem>>, vector<32x16xf32>
    %c0_1 = arith.constant 0 : index
    %c0_2 = arith.constant 0 : index
    %1 = vector.load %arg1[%c0_1, %c0_2] : memref<16x128xf32, #tpu.memory_space<vmem>>, vector<16x128xf32>
    %cst = arith.constant dense<0.000000e+00> : vector<32x128xf32>
    %2 = tpu.matmul %0, %1, %cst {dimension_numbers = #tpu.dot_dimension_numbers<[1], [0], [0], [1], [0, 0, 1, 1], [], []>} : vector<32x16xf32>, vector<16x128xf32>, vector<32x128xf32> -> vector<32x128xf32>
    %c0_3 = arith.constant 0 : index
    %c0_4 = arith.constant 0 : index
    %3 = vector.load %arg4[%c0_3, %c0_4] : memref<32x16xf32, #tpu.memory_space<vmem>>, vector<32x16xf32>
    %c0_5 = arith.constant 0 : index
    %c0_6 = arith.constant 0 : index
    %4 = vector.load %arg2[%c0_5, %c0_6] : memref<16x128xf32, #tpu.memory_space<vmem>>, vector<16x128xf32>
    %cst_7 = arith.constant dense<0.000000e+00> : vector<32x128xf32>
    %5 = tpu.matmul %3, %4, %cst_7 {dimension_numbers = #tpu.dot_dimension_numbers<[1], [0], [0], [1], [0, 0, 1, 1], [], []>} : vector<32x16xf32>, vector<16x128xf32>, vector<32x128xf32> -> vector<32x128xf32>
    %6 = arith.addf %2, %5 : vector<32x128xf32>
    %c0_8 = arith.constant 0 : index
    %c0_9 = arith.constant 0 : index
    %7 = vector.load %arg5[%c0_8, %c0_9] : memref<32x1xf32, #tpu.memory_space<vmem>>, vector<32x1xf32>
    %8 = vector.broadcast %7 : vector<32x1xf32> to vector<32x128xf32>
    %9 = arith.addf %6, %8 : vector<32x128xf32>
    %cst_10 = arith.constant 0.000000e+00 : f32
    %10 = vector.broadcast %cst_10 : f32 to vector<32x128xf32>
    %11 = arith.maximumf %9, %10 : vector<32x128xf32>
    %c0_11 = arith.constant 0 : index
    %c0_12 = arith.constant 0 : index
    %12 = vector.load %arg6[%c0_11, %c0_12] : memref<32x1xf32, #tpu.memory_space<vmem>>, vector<32x1xf32>
    %13 = vector.broadcast %12 : vector<32x1xf32> to vector<32x128xf32>
    %14 = arith.mulf %11, %13 : vector<32x128xf32>
    %cst_13 = arith.constant dense<0.000000e+00> : vector<128xf32>
    %15 = vector.multi_reduction <add>, %14, %cst_13 [0] : vector<32x128xf32> to vector<128xf32>
    %16 = vector.shape_cast %15 : vector<128xf32> to vector<1x128xf32>
    %c0_14 = arith.constant 0 : index
    %c0_15 = arith.constant 0 : index
    %17 = vector.load %arg7[%c0_14, %c0_15] : memref<1x128xf32, #tpu.memory_space<vmem>>, vector<1x128xf32>
    tpu.vector_store %arg7[%c0_14, %c0_15], %16 {strides = array<i32>} : memref<1x128xf32, #tpu.memory_space<vmem>>, vector<1x128xf32>,
    return
  }
  func.func @transform_0(%arg0: i32) -> (i32, i32) {
    %c0_i32 = arith.constant 0 : i32
    %c0_i32_0 = arith.constant 0 : i32
    return %c0_i32, %arg0 : i32, i32
  }
  func.func @transform_1(%arg0: i32) -> (i32, i32) {
    %c0_i32 = arith.constant 0 : i32
    %c0_i32_0 = arith.constant 0 : i32
    return %c0_i32, %arg0 : i32, i32
  }
  func.func @transform_2(%arg0: i32) -> (i32, i32) {
    %c0_i32 = arith.constant 0 : i32
    %c0_i32_0 = arith.constant 0 : i32
    %c0_i32_1 = arith.constant 0 : i32
    return %c0_i32, %c0_i32_0 : i32, i32
  }
  func.func @transform_3(%arg0: i32) -> (i32, i32) {
    %c0_i32 = arith.constant 0 : i32
    %c0_i32_0 = arith.constant 0 : i32
    %c0_i32_1 = arith.constant 0 : i32
    return %c0_i32, %c0_i32_0 : i32, i32
  }
  func.func @transform_4(%arg0: i32) -> (i32, i32) {
    %c0_i32 = arith.constant 0 : i32
    %c0_i32_0 = arith.constant 0 : i32
    %c0_i32_1 = arith.constant 0 : i32
    return %c0_i32, %c0_i32_0 : i32, i32
  }
  func.func @transform_5(%arg0: i32) -> (i32, i32) {
    %c0_i32 = arith.constant 0 : i32
    %c0_i32_0 = arith.constant 0 : i32
    %c0_i32_1 = arith.constant 0 : i32
    return %c0_i32, %c0_i32_0 : i32, i32
  }
  func.func @transform_6(%arg0: i32) -> (i32, i32) {
    %c0_i32 = arith.constant 0 : i32
    %c0_i32_0 = arith.constant 0 : i32
    return %c0_i32, %arg0 : i32, i32
  }
}

</mosaic_0001>

<llo_original>
// kernel: mlp_forward.1
$region0: #{mlp_forward.1}
  #allocation0 [shape = 'u32[]', space=smem, size = 0x4, offset = 0x4, fixed_abs, tag = 'smem constant byte address 0x4 - core index']
  #allocation1 [shape = 'u32[144,128]{1,0:T(1,128)}', space=vmem, size = 0x12000, scoped, tag = 'internal scratch']
  %s0 = inlined_call_operand.vmem [shape: f32[16,128], index: 0, kind: input, shape index: {}]
  %s1 = inlined_call_operand.vmem [shape: f32[16,128], index: 1, kind: input, shape index: {}]
  %s2 = inlined_call_operand.vmem [shape: f32[32,16], index: 2, kind: input, shape index: {}]
  %s3 = inlined_call_operand.vmem [shape: f32[32,16], index: 3, kind: input, shape index: {}]
  %s4 = inlined_call_operand.vmem [shape: f32[32,1], index: 4, kind: input, shape index: {}]
  %s5 = inlined_call_operand.vmem [shape: f32[32,1], index: 5, kind: input, shape index: {}]
  %s6 = inlined_call_operand.vmem [shape: f32[1,128], index: 6, kind: output, shape index: {}]
  %s7 = sld [smem:[#allocation0]]
  $region34: #{mlp_forward.1} parent=0
    _
  %s9 = ssub.s32 1, %s7
  %s10 = scalar_select 0, %s9, %s7
  // Predicated region
  $region2: #{mlp_forward.1} parent=0 // pred_check
    _
  $region3: #{mlp_forward.1} parent=0 // pred_check_branch
    %12 = sbr.rel (0) target = $region5
  $region4: #{mlp_forward.1} parent=0 // pred_region
    _
  $region5: #{mlp_forward.1} parent=0 // pred_fallthru
    _
  // Predicated region
  $region6: #{mlp_forward.1} parent=0 // pred_check
    _
  $region7: #{mlp_forward.1} parent=0 // pred_check_branch
    %14 = sbr.rel (0) target = $region9
  $region8: #{mlp_forward.1} parent=0 // pred_region
    _
  $region9: #{mlp_forward.1} parent=0 // pred_fallthru
    _
  // Predicated region
  $region10: #{mlp_forward.1} parent=0 // pred_check
    _
  $region11: #{mlp_forward.1} parent=0 // pred_check_branch
    %16 = sbr.rel (0) target = $region13
  $region12: #{mlp_forward.1} parent=0 // pred_region
    _
  $region13: #{mlp_forward.1} parent=0 // pred_fallthru
    _
  // Predicated region
  $region14: #{mlp_forward.1} parent=0 // pred_check
    _
  $region15: #{mlp_forward.1} parent=0 // pred_check_branch
    %18 = sbr.rel (0) target = $region17
  $region16: #{mlp_forward.1} parent=0 // pred_region
    _
  $region17: #{mlp_forward.1} parent=0 // pred_fallthru
    _
  // Predicated region
  $region18: #{mlp_forward.1} parent=0 // pred_check
    _
  $region19: #{mlp_forward.1} parent=0 // pred_check_branch
    %20 = sbr.rel (0) target = $region21
  $region20: #{mlp_forward.1} parent=0 // pred_region
    _
  $region21: #{mlp_forward.1} parent=0 // pred_fallthru
    _
  // Predicated region
  $region22: #{mlp_forward.1} parent=0 // pred_check
    _
  $region23: #{mlp_forward.1} parent=0 // pred_check_branch
    %22 = sbr.rel (0) target = $region25
  $region24: #{mlp_forward.1} parent=0 // pred_region
    _
  $region25: #{mlp_forward.1} parent=0 // pred_fallthru
    _
  %v23 = vld [vmem:[%s2] sm:$0xff]
  %v24 = vld [vmem:[%s2 + $0x8] sm:$0xff]
  %v25 = vld [vmem:[%s2 + $0x10] sm:$0xff]
  %v26 = vld [vmem:[%s2 + $0x18] sm:$0xff]
  %v27 = vld [vmem:[%s0] sm:$0xff]
  %v28 = vld [vmem:[%s0 + $0x8] sm:$0xff]
  %v29 = vld [vmem:[%s3] sm:$0xff]
  %v30 = vld [vmem:[%s3 + $0x8] sm:$0xff]
  %v31 = vld [vmem:[%s3 + $0x10] sm:$0xff]
  %v32 = vld [vmem:[%s3 + $0x18] sm:$0xff]
  %v33 = vld [vmem:[%s1] sm:$0xff]
  %v34 = vld [vmem:[%s1 + $0x8] sm:$0xff]
  %vm35 = vcmask 130048
  %v37 = vsel %vm35, %v29, 0
  %v40 = vsel %vm35, %v30, 0
  %v43 = vsel %vm35, %v31, 0
  %v46 = vsel %vm35, %v32, 0
  %48 = vmatprep.subr.mxu0 0.0
  %49 = vmatpush1.msra.mxu0 %v33
  %50 = vmatprep.subr.mxu0 0.0
  %51 = vmatpush1.msra.mxu0 %v34
  %52 = vmatprep.subr.mxu0 0.0
  %53 = vmatpush1.msra.mxu0 0.0
  %54 = vmatprep.subr.mxu0 0.0
  %55 = vmatpush1.msra.mxu0 0.0
  %56 = vmatprep.subr.mxu0 0.0
  %57 = vmatpush1.msra.mxu0 0.0
  %58 = vmatprep.subr.mxu0 0.0
  %59 = vmatpush1.msra.mxu0 0.0
  %60 = vmatprep.subr.mxu0 0.0
  %61 = vmatpush1.msra.mxu0 0.0
  %62 = vmatprep.subr.mxu0 0.0
  %63 = vmatpush1.msra.mxu0 0.0
  %64 = vmatprep.subr.mxu0 0.0
  %65 = vmatpush1.msra.mxu0 0.0
  %66 = vmatprep.subr.mxu0 0.0
  %67 = vmatpush1.msra.mxu0 0.0
  %68 = vmatprep.subr.mxu0 0.0
  %69 = vmatpush1.msra.mxu0 0.0
  %70 = vmatprep.subr.mxu0 0.0
  %71 = vmatpush1.msra.mxu0 0.0
  %72 = vmatprep.subr.mxu0 0.0
  %73 = vmatpush1.msra.mxu0 0.0
  %74 = vmatprep.subr.mxu0 0.0
  %75 = vmatpush1.msra.mxu0 0.0
  %76 = vmatprep.subr.mxu0 0.0
  %77 = vmatpush1.msra.mxu0 0.0
  %78 = vmatprep.subr.mxu0 0.0
  %79 = vmatpush1.msra.mxu0 0.0
  %80 = vmatprep.subr.mxu0 0.0
  %81 = vmatpush1.msra.mxu0 0.0
  %82 = vmatprep.subr.mxu0 0.0
  %83 = vmatpush1.msra.mxu0 0.0
  %84 = vmatprep.subr.mxu0 0.0
  %85 = vmatpush1.msra.mxu0 0.0
  %86 = vmatprep.subr.mxu0 0.0
  %87 = vmatpush1.msra.mxu0 0.0
  %88 = vmatprep.subr.mxu0 0.0
  %89 = vmatpush1.msra.mxu0 0.0
  %90 = vmatprep.subr.mxu0 0.0
  %91 = vmatpush1.msra.mxu0 0.0
  %92 = vmatprep.subr.mxu0 0.0
  %93 = vmatpush1.msra.mxu0 0.0
  %94 = vmatprep.subr.mxu0 0.0
  %95 = vmatpush1.msra.mxu0 0.0
  %96 = vmatprep.subr.mxu0 0.0
  %97 = vmatpush1.msra.mxu0 0.0
  %98 = vmatprep.subr.mxu0 0.0
  %99 = vmatpush1.msra.mxu0 0.0
  %100 = vmatprep.subr.mxu0 0.0
  %101 = vmatpush1.msra.mxu0 0.0
  %102 = vmatprep.subr.mxu0 0.0
  %103 = vmatpush1.msra.mxu0 0.0
  %104 = vmatprep.subr.mxu0 0.0
  %105 = vmatpush1.msra.mxu0 0.0
  %106 = vmatprep.subr.mxu0 0.0
  %107 = vmatpush1.msra.mxu0 0.0
  %108 = vmatprep.subr.mxu0 0.0
  %109 = vmatpush1.msra.mxu0 0.0
  %110 = vmatprep.subr.mxu0 0.0
  %111 = vmatpush1.msra.mxu0 0.0
  %112 = vmatprep.mubr.f32.mxu0 0.0
  %113 = vmatmul.mubr.f32.gmra.mrb[0].mxu0 %v37
  %v114 = vpop.f32.mrb[0].mxu0
  %v115 = vadd.f32 0.0, %v114
  %v116 = vpop.f32.mrb[0].mxu0
  %117 = vmatprep.mubr.f32.mxu0 0.0
  %118 = vmatmul.mubr.f32.gmra.mrb[0].mxu0 %v40
  %v119 = vpop.f32.mrb[0].mxu0
  %v120 = vadd.f32 0.0, %v119
  %v121 = vpop.f32.mrb[0].mxu0
  %122 = vmatprep.mubr.f32.mxu0 0.0
  %123 = vmatmul.mubr.f32.gmra.mrb[0].mxu0 %v43
  %v124 = vpop.f32.mrb[0].mxu0
  %v125 = vadd.f32 0.0, %v124
  %v126 = vpop.f32.mrb[0].mxu0
  %127 = vmatprep.mubr.f32.mxu0 0.0
  %128 = vmatmul.mubr.f32.gmra.mrb[0].mxu0 %v46
  %v129 = vpop.f32.mrb[0].mxu0
  %v130 = vadd.f32 0.0, %v129
  %v131 = vpop.f32.mrb[0].mxu0
  %132 = vdwg.mxu0
  %v134 = vsel %vm35, %v23, 0
  %v137 = vsel %vm35, %v24, 0
  %v140 = vsel %vm35, %v25, 0
  %v143 = vsel %vm35, %v26, 0
  %145 = vmatprep.subr.mxu0 0.0
  %146 = vmatpush1.msra.mxu0 %v27
  %147 = vmatprep.subr.mxu0 0.0
  %148 = vmatpush1.msra.mxu0 %v28
  %149 = vmatprep.subr.mxu0 0.0
  %150 = vmatpush1.msra.mxu0 0.0
  %151 = vmatprep.subr.mxu0 0.0
  %152 = vmatpush1.msra.mxu0 0.0
  %153 = vmatprep.subr.mxu0 0.0
  %154 = vmatpush1.msra.mxu0 0.0
  %155 = vmatprep.subr.mxu0 0.0
  %156 = vmatpush1.msra.mxu0 0.0
  %157 = vmatprep.subr.mxu0 0.0
  %158 = vmatpush1.msra.mxu0 0.0
  %159 = vmatprep.subr.mxu0 0.0
  %160 = vmatpush1.msra.mxu0 0.0
  %161 = vmatprep.subr.mxu0 0.0
  %162 = vmatpush1.msra.mxu0 0.0
  %163 = vmatprep.subr.mxu0 0.0
  %164 = vmatpush1.msra.mxu0 0.0
  %165 = vmatprep.subr.mxu0 0.0
  %166 = vmatpush1.msra.mxu0 0.0
  %167 = vmatprep.subr.mxu0 0.0
  %168 = vmatpush1.msra.mxu0 0.0
  %169 = vmatprep.subr.mxu0 0.0
  %170 = vmatpush1.msra.mxu0 0.0
  %171 = vmatprep.subr.mxu0 0.0
  %172 = vmatpush1.msra.mxu0 0.0
  %173 = vmatprep.subr.mxu0 0.0
  %174 = vmatpush1.msra.mxu0 0.0
  %175 = vmatprep.subr.mxu0 0.0
  %176 = vmatpush1.msra.mxu0 0.0
  %177 = vmatprep.subr.mxu0 0.0
  %178 = vmatpush1.msra.mxu0 0.0
  %179 = vmatprep.subr.mxu0 0.0
  %180 = vmatpush1.msra.mxu0 0.0
  %181 = vmatprep.subr.mxu0 0.0
  %182 = vmatpush1.msra.mxu0 0.0
  %183 = vmatprep.subr.mxu0 0.0
  %184 = vmatpush1.msra.mxu0 0.0
  %185 = vmatprep.subr.mxu0 0.0
  %186 = vmatpush1.msra.mxu0 0.0
  %187 = vmatprep.subr.mxu0 0.0
  %188 = vmatpush1.msra.mxu0 0.0
  %189 = vmatprep.subr.mxu0 0.0
  %190 = vmatpush1.msra.mxu0 0.0
  %191 = vmatprep.subr.mxu0 0.0
  %192 = vmatpush1.msra.mxu0 0.0
  %193 = vmatprep.subr.mxu0 0.0
  %194 = vmatpush1.msra.mxu0 0.0
  %195 = vmatprep.subr.mxu0 0.0
  %196 = vmatpush1.msra.mxu0 0.0
  %197 = vmatprep.subr.mxu0 0.0
  %198 = vmatpush1.msra.mxu0 0.0
  %199 = vmatprep.subr.mxu0 0.0
  %200 = vmatpush1.msra.mxu0 0.0
  %201 = vmatprep.subr.mxu0 0.0
  %202 = vmatpush1.msra.mxu0 0.0
  %203 = vmatprep.subr.mxu0 0.0
  %204 = vmatpush1.msra.mxu0 0.0
  %205 = vmatprep.subr.mxu0 0.0
  %206 = vmatpush1.msra.mxu0 0.0
  %207 = vmatprep.subr.mxu0 0.0
  %208 = vmatpush1.msra.mxu0 0.0
  %209 = vmatprep.mubr.f32.mxu0 0.0
  %210 = vmatmul.mubr.f32.gmra.mrb[0].mxu0 %v134
  %v211 = vpop.f32.mrb[0].mxu0
  %v212 = vadd.f32 %v115, %v211
  %v213 = vpop.f32.mrb[0].mxu0
  %214 = vmatprep.mubr.f32.mxu0 0.0
  %215 = vmatmul.mubr.f32.gmra.mrb[0].mxu0 %v137
  %v216 = vpop.f32.mrb[0].mxu0
  %v217 = vadd.f32 %v120, %v216
  %v218 = vpop.f32.mrb[0].mxu0
  %219 = vmatprep.mubr.f32.mxu0 0.0
  %220 = vmatmul.mubr.f32.gmra.mrb[0].mxu0 %v140
  %v221 = vpop.f32.mrb[0].mxu0
  %v222 = vadd.f32 %v125, %v221
  %v223 = vpop.f32.mrb[0].mxu0
  %224 = vmatprep.mubr.f32.mxu0 0.0
  %225 = vmatmul.mubr.f32.gmra.mrb[0].mxu0 %v143
  %v226 = vpop.f32.mrb[0].mxu0
  %v227 = vadd.f32 %v130, %v226
  %v228 = vpop.f32.mrb[0].mxu0
  %229 = vdwg.mxu0
  %v230 = vld [vmem:[%s4] sm:$0xff]
  %v231 = vld [vmem:[%s4 + $0x8] sm:$0xff]
  %v232 = vld [vmem:[%s4 + $0x10] sm:$0xff]
  %v233 = vld [vmem:[%s4 + $0x18] sm:$0xff]
  %235 = vset.pattern.permute.xlu0 0
  %236 = vperm.xlu0 %235, %v230
  %v237 = vpop.permute.xlu0 %236
  %240 = vset.pattern.permute.xlu0 0
  %241 = vperm.xlu0 %240, %v231
  %v242 = vpop.permute.xlu0 %241
  %245 = vset.pattern.permute.xlu0 0
  %246 = vperm.xlu0 %245, %v232
  %v247 = vpop.permute.xlu0 %246
  %250 = vset.pattern.permute.xlu0 0
  %251 = vperm.xlu0 %250, %v233
  %v252 = vpop.permute.xlu0 %251
  %v254 = vadd.f32 %v212, %v237
  %v255 = vadd.f32 %v217, %v242
  %v256 = vadd.f32 %v222, %v247
  %v257 = vadd.f32 %v227, %v252
  %v258 = vmax.f32 %v254, 0.0
  %v259 = vmax.f32 %v255, 0.0
  %v260 = vmax.f32 %v256, 0.0
  %v261 = vmax.f32 %v257, 0.0
  %v262 = vld [vmem:[%s5] sm:$0xff]
  %v263 = vld [vmem:[%s5 + $0x8] sm:$0xff]
  %v264 = vld [vmem:[%s5 + $0x10] sm:$0xff]
  %v265 = vld [vmem:[%s5 + $0x18] sm:$0xff]
  %267 = vset.pattern.permute.xlu0 0
  %268 = vperm.xlu0 %267, %v262
  %v269 = vpop.permute.xlu0 %268
  %272 = vset.pattern.permute.xlu0 0
  %273 = vperm.xlu0 %272, %v263
  %v274 = vpop.permute.xlu0 %273
  %277 = vset.pattern.permute.xlu0 0
  %278 = vperm.xlu0 %277, %v264
  %v279 = vpop.permute.xlu0 %278
  %282 = vset.pattern.permute.xlu0 0
  %283 = vperm.xlu0 %282, %v265
  %v284 = vpop.permute.xlu0 %283
  %v286 = vmul.f32 %v258, %v269
  %v287 = vmul.f32 %v259, %v274
  %v288 = vmul.f32 %v260, %v279
  %v289 = vmul.f32 %v261, %v284
  %v290 = vadd.f32 %v286, %v287
  %v291 = vadd.f32 %v290, %v288
  %v292 = vadd.f32 %v291, %v289
  %v293 = vrot.slane %v292, 4
  %v294 = vadd.f32 %v292, %v293
  %v295 = vrot.slane %v294, 2
  %v296 = vadd.f32 %v294, %v295
  %v297 = vrot.slane %v296, 1
  %v298 = vadd.f32 %v296, %v297
  %299 = vst [vmem:[%s6] sm:$0x1] %v298
  // Predicated region
  $region26: #{mlp_forward.1} parent=0 // pred_check
    _
  $region27: #{mlp_forward.1} parent=0 // pred_check_branch
    %301 = sbr.rel (0) target = $region29
  $region28: #{mlp_forward.1} parent=0 // pred_region
    _
  $region29: #{mlp_forward.1} parent=0 // pred_fallthru
    _
  // Predicated region
  $region30: #{mlp_forward.1} parent=0 // pred_check
    _
  $region31: #{mlp_forward.1} parent=0 // pred_check_branch
    %303 = sbr.rel (0) target = $region33
  $region32: #{mlp_forward.1} parent=0 // pred_region
    _
  $region33: #{mlp_forward.1} parent=0 // pred_fallthru
    _

</llo_original>
